<compile_context>
chip_gen: v5e
topology: v5e:2x2
jax: 0.10.0
libtpu: 0.0.40
codegen_flags: <defaults>
</compile_context>

<pallas_src>
import math
import functools

import jax
import jax.numpy as jnp
from jax.experimental import pallas as pl
from jax.experimental.pallas import tpu as pltpu

_NEG_INF = -1e30  # finite "minus infinity": avoids inf-inf NaNs in the online softmax


def _pick_tile(dim, target, align):
    """Largest tile <= target that divides dim and is a multiple of align.
    Falls back to the full dim (always a legal BlockSpec block)."""
    if dim <= target:
        return dim
    t = (target // align) * align
    while t >= align:
        if dim % t == 0:
            return t
        t -= align
    return dim


# ---------------- tiled Pallas linear: out = x @ W + b ----------------
def _linear_kernel(x_ref, w_ref, b_ref, o_ref, acc_ref):
    kk = pl.program_id(2)

    @pl.when(kk == 0)
    def _init():
        acc_ref[...] = jnp.zeros_like(acc_ref)

    # Operands arrive already in bf16 (cast once in the wrapper, not per tile).
    acc_ref[...] += jnp.dot(x_ref[...], w_ref[...],
                            preferred_element_type=jnp.float32)

    @pl.when(kk == pl.num_programs(2) - 1)
    def _finalize():
        o_ref[...] = (acc_ref[...] + b_ref[...]).astype(o_ref.dtype)


def pallas_linear(x2d, w, b, *, out_dtype=jnp.float32,
                  tm_target=256, tn_target=256, tk_target=512):
    x2d = x2d.astype(jnp.bfloat16)
    w = w.astype(jnp.bfloat16)
    b = b.astype(jnp.float32)
    M, K = x2d.shape
    K2, N = w.shape
    assert K == K2
    tm = _pick_tile(M, tm_target, 8)
    tn = _pick_tile(N, tn_target, 128)
    tk = _pick_tile(K, tk_target, 128)
    grid = (M // tm, N // tn, K // tk)
    return pl.pallas_call(
        _linear_kernel,
        out_shape=jax.ShapeDtypeStruct((M, N), out_dtype),
        grid=grid,
        in_specs=[
            pl.BlockSpec((tm, tk), lambda i, j, kk: (i, kk)),
            pl.BlockSpec((tk, tn), lambda i, j, kk: (kk, j)),
            pl.BlockSpec((1, tn), lambda i, j, kk: (0, j)),
        ],
        out_specs=pl.BlockSpec((tm, tn), lambda i, j, kk: (i, j)),
        scratch_shapes=[pltpu.VMEM((tm, tn), jnp.float32)],
        compiler_params=pltpu.CompilerParams(
            dimension_semantics=("parallel", "parallel", "arbitrary")),
    )(x2d, w, b.reshape(1, N))


# ---------------- flash-style causal attention (GQA, head-batched) ----------------
def _flash_attn_kernel(q_ref, k_ref, v_ref, o_ref, m_ref, l_ref, acc_ref,
                       *, r, tq, tkv, d, out_fused):
    qi = pl.program_id(2)
    ki = pl.program_id(3)
    nkv = pl.num_programs(3)

    @pl.when(ki == 0)
    def _init():
        m_ref[...] = jnp.full_like(m_ref, _NEG_INF)
        l_ref[...] = jnp.zeros_like(l_ref)
        acc_ref[...] = jnp.zeros_like(acc_ref)

    q_start = qi * tq
    kv_start = ki * tkv

    # Skip kv blocks entirely above the causal diagonal (compute + DMA, see index_map).
    @pl.when(kv_start <= q_start + (tq - 1))
    def _compute():
        # All r GQA query heads sharing this kv head in ONE matmul per step.
        q = q_ref[0].reshape(r * tq, d)          # (r*TQ, D) bf16, pre-scaled
        k = k_ref[0, 0]                          # (TKV, D)  bf16
        v = v_ref[0, 0]                          # (TKV, D)  bf16
        s = jax.lax.dot_general(                 # q @ k.T -> (r*TQ, TKV), f32 acc
            q, k, (((1,), (1,)), ((), ())),
            preferred_element_type=jnp.float32)

        def update(scores):
            m_old = m_ref[...]
            m_new = jnp.maximum(m_old, jnp.max(scores, axis=-1, keepdims=True))
            alpha = jnp.exp(m_old - m_new)
            p = jnp.exp(scores - m_new)
            l_ref[...] = alpha * l_ref[...] + jnp.sum(p, axis=-1, keepdims=True)
            acc_ref[...] = alpha * acc_ref[...] + jnp.dot(
                p.astype(v.dtype), v, preferred_element_type=jnp.float32)
            m_ref[...] = m_new

        # Only the diagonal-straddling block pays for the mask; interior
        # (fully-visible) blocks run the plain update.
        straddles = kv_start + (tkv - 1) > q_start

        @pl.when(straddles)
        def _masked():
            row = q_start + jax.lax.broadcasted_iota(jnp.int32, (tq, tkv), 0)
            col = kv_start + jax.lax.broadcasted_iota(jnp.int32, (tq, tkv), 1)
            causal = col <= row                                    # (TQ, TKV)
            s3 = jnp.where(causal[None, :, :], s.reshape(r, tq, tkv), _NEG_INF)
            update(s3.reshape(r * tq, tkv))

        @pl.when(jnp.logical_not(straddles))
        def _unmasked():
            update(s)

    @pl.when(ki == nkv - 1)
    def _finalize():
        inv_l = pl.reciprocal(l_ref[...], approx=True)   # EUP slot, ~free
        out = (acc_ref[...] * inv_l).astype(o_ref.dtype)  # (r*TQ, D)
        for g in range(r):                                # epilogue-only lane stores
            blk = out[g * tq:(g + 1) * tq, :]
            if out_fused:
                o_ref[0, :, g * d:(g + 1) * d] = blk
            else:
                o_ref[0, 0, :, g * d:(g + 1) * d] = blk


def pallas_flash_attention(q, k, v, qhead_ratio, *, tq_target=512, tkv_target=1024):
    """q: (B, HQ, T, D); k, v: (B, H, T, D); bf16, q pre-scaled & RoPE'd.
    Returns (B, T, HQ*D) bf16 in the layout c_proj consumes."""
    B, HQ, T, D = q.shape
    _, H, _, _ = k.shape
    r = qhead_ratio
    assert HQ == H * r
    tq = _pick_tile(T, tq_target, 8)
    tkv = _pick_tile(T, tkv_target, 128)
    grid = (B, H, T // tq, T // tkv)

    # Lane-dense fused output layout when legal (r*D multiple of 128 lanes).
    out_fused = (H == 1) or ((r * D) % 128 == 0)

    def kv_index(b, j, qi, ki):
        # Clamp to the last causally-needed kv block: fully-masked steps keep
        # the same block index => Pallas skips the redundant HBM DMA.
        ki_max = (qi * tq + (tq - 1)) // tkv
        return (b, j, jnp.minimum(ki, ki_max), 0)

    in_specs = [
        pl.BlockSpec((1, r, tq, D), lambda b, j, qi, ki: (b, j, qi, 0)),
        pl.BlockSpec((1, 1, tkv, D), kv_index),
        pl.BlockSpec((1, 1, tkv, D), kv_index),
    ]
    if out_fused:
        out_shape = jax.ShapeDtypeStruct((B, T, HQ * D), q.dtype)
        out_spec = pl.BlockSpec((1, tq, r * D), lambda b, j, qi, ki: (b, qi, j))
    else:
        out_shape = jax.ShapeDtypeStruct((B, H, T, r * D), q.dtype)
        out_spec = pl.BlockSpec((1, 1, tq, r * D), lambda b, j, qi, ki: (b, j, qi, 0))

    kernel = functools.partial(_flash_attn_kernel, r=r, tq=tq, tkv=tkv, d=D,
                               out_fused=out_fused)
    y = pl.pallas_call(
        kernel,
        out_shape=out_shape,
        grid=grid,
        in_specs=in_specs,
        out_specs=out_spec,
        scratch_shapes=[
            pltpu.VMEM((r * tq, 1), jnp.float32),   # running max
            pltpu.VMEM((r * tq, 1), jnp.float32),   # running denom
            pltpu.VMEM((r * tq, D), jnp.float32),   # output accumulator
        ],
        compiler_params=pltpu.CompilerParams(
            dimension_semantics=("parallel", "parallel", "parallel", "arbitrary")),
    )(q, k, v)

    if out_fused:
        return y                                         # (B, T, HQ*D)
    # Fallback layout: (B, H, T, r*D) -> (B, T, HQ*D) head-major.
    return (y.reshape(B, H, T, r, D)
             .transpose(0, 2, 1, 3, 4)
             .reshape(B, T, HQ * D))


# ---------------- weight prep (hoistable): gating slice + RoPE de-interleave ----------------
def _prepare_weights(params, h, d, r):
    """Slice off gating columns (unused by sdpa), permute the q/k head columns
    into the de-interleaved rotate-half layout (q.k^T is invariant to a shared
    per-head D permutation), cast matmul weights to bf16.
    In deployment this is a one-time transform of the checkpoint."""
    hq = r * h
    qkv_size = (r + 2) * h * d
    dperm = jnp.concatenate([jnp.arange(0, d, 2), jnp.arange(1, d, 2)])   # new -> old
    q_cols = (jnp.arange(hq)[:, None] * d + dperm[None, :]).reshape(-1)
    k_cols = hq * d + (jnp.arange(h)[:, None] * d + dperm[None, :]).reshape(-1)
    v_cols = (hq + h) * d + jnp.arange(h * d)
    col_perm = jnp.concatenate([q_cols, k_cols, v_cols])
    w_attn = params["w_attn"][:, :qkv_size][:, col_perm].astype(jnp.bfloat16)
    b_attn = params["b_attn"][:qkv_size][col_perm].astype(jnp.float32)
    w_proj = params["w_proj"].astype(jnp.bfloat16)
    b_proj = params["b_proj"].astype(jnp.float32)
    return w_attn, b_attn, w_proj, b_proj


# ---------------- sinusoidal embeddings + rotate-half RoPE (de-interleaved basis) ----------------
def sincos_half(T, d):
    pos = jnp.arange(T, dtype=jnp.float32)[:, None]                    # (T, 1)
    expo = jnp.arange(0, d, 2, dtype=jnp.float32) / d                  # (d/2,)
    div_term = 2.0 * math.pi / (float(T) ** expo)                      # (d/2,)
    inp = pos * div_term[None, :]                                      # (T, d/2)
    return jnp.sin(inp), jnp.cos(inp)


def apply_rope_rotate_half(x, sin, cos):
    # x: (B, T, H, D) already in de-interleaved (rotate-half) layout.
    # Contiguous half-slices only -- no stride-2 lane shuffles.
    x = x.astype(jnp.float32)
    d2 = x.shape[-1] // 2
    x1 = x[..., :d2]
    x2 = x[..., d2:]
    sin = sin[None, :, None, :]
    cos = cos[None, :, None, :]
    return jnp.concatenate([x1 * cos - x2 * sin, x2 * cos + x1 * sin], axis=-1)


# ---------------- module forward ----------------
def causal_self_attention_forward(x, params, cfg, *,
                                  attn_tq_target=512, attn_tkv_target=1024):
    B, T, C = x.shape
    h, d, r = cfg["n_head"], cfg["head_size"], cfg["qhead_ratio"]
    hq = r * h
    assert d % 2 == 0, "interleaved RoPE requires an even head_size"
    qkv_size = (r + 2) * h * d

    w_attn, b_attn, w_proj, b_proj = _prepare_weights(params, h, d, r)

    # c_attn (bf16 operands, bf16 output -- q/k/v are consumed in bf16 anyway).
    qkv = pallas_linear(x.reshape(B * T, C), w_attn, b_attn, out_dtype=jnp.bfloat16)
    qkv = qkv.reshape(B, T, qkv_size)
    q = qkv[..., : hq * d].reshape(B, T, hq, d)
    k = qkv[..., hq * d:(hq + h) * d].reshape(B, T, h, d)
    v = qkv[..., (hq + h) * d:].reshape(B, T, h, d)

    # RoPE in f32 (rotate-half basis); scale + bf16 cast + transpose fuse in XLA.
    sin, cos = sincos_half(T, d)
    q = apply_rope_rotate_half(q, sin, cos)
    k = apply_rope_rotate_half(k, sin, cos)

    q = (q * (1.0 / math.sqrt(d))).transpose(0, 2, 1, 3).astype(jnp.bfloat16)
    k = k.transpose(0, 2, 1, 3).astype(jnp.bfloat16)
    v = v.transpose(0, 2, 1, 3).astype(jnp.bfloat16)

    y = pallas_flash_attention(q, k, v, r,
                               tq_target=attn_tq_target,
                               tkv_target=attn_tkv_target)   # (B, T, HQ*D) bf16

    out = pallas_linear(y.reshape(B * T, hq * d), w_proj, b_proj,
                        out_dtype=jnp.float32)
    return out.reshape(B, T, C)


# ---------------- pure-JAX reference (mirrors the PyTorch code, f32) ----------------
def reference_forward(x, params, cfg):
    hp = jax.lax.Precision.HIGHEST
    B, T, C = x.shape
    h, d, r = cfg["n_head"], cfg["head_size"], cfg["qhead_ratio"]
    hq = r * h
    qkv_size = (r + 2) * h * d

    qkvg = jnp.dot(x.reshape(B * T, C), params["w_attn"], precision=hp) + params["b_attn"]
    qkvg = qkvg.reshape(B, T, -1)
    qkv = qkvg[..., :qkv_size]
    q = qkv[..., : hq * d].reshape(B, T, hq, d)
    k = qkv[..., hq * d:(hq + h) * d].reshape(B, T, h, d)
    v = qkv[..., (hq + h) * d:].reshape(B, T, h, d)

    pos = jnp.arange(T, dtype=jnp.float32)[None, :, None]                         # (1,T,1)
    div = 2.0 * math.pi / (float(T) ** (jnp.arange(0, d, 2, dtype=jnp.float32) / d))
    inp = pos[..., None] * div.reshape(1, 1, 1, -1)                               # (1,T,1,d/2)
    sin = jnp.repeat(jnp.sin(inp), 2, axis=3)
    cos = jnp.repeat(jnp.cos(inp), 2, axis=3)

    def rot_every_two(t):
        t1 = t[..., ::2]
        t2 = t[..., 1::2]
        st = jnp.stack((-t2, t1), axis=-1)
        return st.reshape(t.shape)

    def rope(t):
        return t * cos + rot_every_two(t) * sin

    q = rope(q)
    k = rope(k)

    qT = q.transpose(0, 2, 1, 3)
    kT = jnp.repeat(k.transpose(0, 2, 1, 3), r, axis=1)
    vT = jnp.repeat(v.transpose(0, 2, 1, 3), r, axis=1)
    s = jnp.einsum("bhqd,bhkd->bhqk", qT, kT, precision=hp) / math.sqrt(d)
    mask = jnp.tril(jnp.ones((T, T), dtype=bool))
    s = jnp.where(mask, s, -jnp.inf)
    p = jax.nn.softmax(s, axis=-1)
    y = jnp.einsum("bhqk,bhkd->bhqd", p, vT, precision=hp)
    y = y.transpose(0, 2, 1, 3).reshape(B * T, hq * d)
    out = jnp.dot(y, params["w_proj"], precision=hp) + params["b_proj"]
    return out.reshape(B, T, C)


if __name__ == "__main__":
    def run_case(cfg, B, T, key, tq_target=512, tkv_target=1024):
        C = cfg["n_embd"]
        h, d, r = cfg["n_head"], cfg["head_size"], cfg["qhead_ratio"]
        qkv_size = (r + 2) * h * d
        gating_size = h   # gating enabled -> extra c_attn columns (unused by sdpa)
        k1, k2, k3, k4, k5 = jax.random.split(key, 5)
        params = {
            "w_attn": 0.02 * jax.random.normal(k1, (C, qkv_size + gating_size), jnp.float32),
            "b_attn": 0.01 * jax.random.normal(k2, (qkv_size + gating_size,), jnp.float32),
            "w_proj": 0.02 * jax.random.normal(k3, (r * h * d, C), jnp.float32),
            "b_proj": 0.01 * jax.random.normal(k4, (C,), jnp.float32),
        }
        x = jax.random.normal(k5, (B, T, C), jnp.float32)
        out = causal_self_attention_forward(x, params, cfg,
                                            attn_tq_target=tq_target,
                                            attn_tkv_target=tkv_target)
        out = jax.block_until_ready(out)
        ref = reference_forward(x, params, cfg)
        assert out.shape == (B, T, C)
        err = float(jnp.max(jnp.abs(out - ref)))
        # bf16 MXU operands + approx reciprocal => small drift vs the f32 reference.
        assert jnp.allclose(out, ref, atol=5e-3, rtol=5e-2), f"max abs diff {err}"

    key = jax.random.PRNGKey(0)
    ka, kb = jax.random.split(key)
    # Case 1: lane-dense fused-output path (r*d = 128), multi-tile grid that
    # exercises masked / unmasked / DMA-skipped kv-block classes.
    run_case(dict(n_embd=32, n_head=2, head_size=64, qhead_ratio=2),
             B=2, T=256, key=ka, tq_target=128, tkv_target=128)
    # Case 2: tiny shapes, fallback output layout (r*d = 32, not a multiple of 128).
    run_case(dict(n_embd=32, n_head=2, head_size=16, qhead_ratio=2),
             B=2, T=8, key=kb)
    print("KERNEL_OK")
</pallas_src>

<mosaic_0001>
module attributes {stable_mosaic.version = 11 : i64} {
  func.func @_linear_kernel(%arg0: i32, %arg1: i32, %arg2: i32, %arg3: memref<256x32xbf16, #tpu.memory_space<vmem>>, %arg4: memref<32x256xbf16, #tpu.memory_space<vmem>>, %arg5: memref<1x256xf32, #tpu.memory_space<vmem>>, %arg6: memref<256x256xbf16, #tpu.memory_space<vmem>>, %arg7: memref<256x256xf32, #tpu.memory_space<vmem>>) attributes {dimension_semantics = [#tpu.dimension_semantics<parallel>, #tpu.dimension_semantics<parallel>, #tpu.dimension_semantics<arbitrary>], iteration_bounds = array<i64: 2, 2, 1>, scalar_prefetch = 0 : i64, scratch_operands = 1 : i64, tpu.core_type = #tpu.core_type<tc>, window_params = [{transform_indices = @transform_0, window_bounds = array<i64: 256, 32>}, {transform_indices = @transform_1, window_bounds = array<i64: 32, 256>}, {transform_indices = @transform_2, window_bounds = array<i64: 1, 256>}, {transform_indices = @transform_3, window_bounds = array<i64: 256, 256>}]} {
    %c0_i32 = arith.constant 0 : i32
    %0 = arith.cmpi eq, %arg2, %c0_i32 : i32
    %1 = arith.extui %0 : i1 to i32
    %c0_i32_0 = arith.constant 0 : i32
    %2 = arith.cmpi ne, %1, %c0_i32_0 : i32
    scf.if %2 {
      %cst_10 = arith.constant 0.000000e+00 : f32
      %12 = vector.broadcast %cst_10 : f32 to vector<256x256xf32>
      %c0_11 = arith.constant 0 : index
      %c0_12 = arith.constant 0 : index
      %13 = vector.load %arg7[%c0_11, %c0_12] : memref<256x256xf32, #tpu.memory_space<vmem>>, vector<256x256xf32>
      tpu.vector_store %arg7[%c0_11, %c0_12], %12 {strides = array<i32>} : memref<256x256xf32, #tpu.memory_space<vmem>>, vector<256x256xf32>,
    } else {
    }
    %c0 = arith.constant 0 : index
    %c0_1 = arith.constant 0 : index
    %3 = vector.load %arg7[%c0, %c0_1] : memref<256x256xf32, #tpu.memory_space<vmem>>, vector<256x256xf32>
    %c0_2 = arith.constant 0 : index
    %c0_3 = arith.constant 0 : index
    %4 = vector.load %arg3[%c0_2, %c0_3] : memref<256x32xbf16, #tpu.memory_space<vmem>>, vector<256x32xbf16>
    %c0_4 = arith.constant 0 : index
    %c0_5 = arith.constant 0 : index
    %5 = vector.load %arg4[%c0_4, %c0_5] : memref<32x256xbf16, #tpu.memory_space<vmem>>, vector<32x256xbf16>
    %cst = arith.constant dense<0.000000e+00> : vector<256x256xf32>
    %6 = tpu.matmul %4, %5, %cst {dimension_numbers = #tpu.dot_dimension_numbers<[1], [0], [0], [1], [0, 0, 1, 1], [], []>} : vector<256x32xbf16>, vector<32x256xbf16>, vector<256x256xf32> -> vector<256x256xf32>
    %7 = arith.addf %3, %6 : vector<256x256xf32>
    %c0_6 = arith.constant 0 : index
    %c0_7 = arith.constant 0 : index
    %8 = vector.load %arg7[%c0_6, %c0_7] : memref<256x256xf32, #tpu.memory_space<vmem>>, vector<256x256xf32>
    tpu.vector_store %arg7[%c0_6, %c0_7], %7 {strides = array<i32>} : memref<256x256xf32, #tpu.memory_space<vmem>>, vector<256x256xf32>,
    %c0_i32_8 = arith.constant 0 : i32
    %9 = arith.cmpi eq, %arg2, %c0_i32_8 : i32
    %10 = arith.extui %9 : i1 to i32
    %c0_i32_9 = arith.constant 0 : i32
    %11 = arith.cmpi ne, %10, %c0_i32_9 : i32
    scf.if %11 {
      %c0_10 = arith.constant 0 : index
      %c0_11 = arith.constant 0 : index
      %12 = vector.load %arg7[%c0_10, %c0_11] : memref<256x256xf32, #tpu.memory_space<vmem>>, vector<256x256xf32>
      %c0_12 = arith.constant 0 : index
      %c0_13 = arith.constant 0 : index
      %13 = vector.load %arg5[%c0_12, %c0_13] : memref<1x256xf32, #tpu.memory_space<vmem>>, vector<1x256xf32>
      %14 = vector.broadcast %13 : vector<1x256xf32> to vector<256x256xf32>
      %15 = arith.addf %12, %14 : vector<256x256xf32>
      %16 = arith.truncf %15 : vector<256x256xf32> to vector<256x256xbf16>
      %c0_14 = arith.constant 0 : index
      %c0_15 = arith.constant 0 : index
      %17 = vector.load %arg6[%c0_14, %c0_15] : memref<256x256xbf16, #tpu.memory_space<vmem>>, vector<256x256xbf16>
      tpu.vector_store %arg6[%c0_14, %c0_15], %16 {strides = array<i32>} : memref<256x256xbf16, #tpu.memory_space<vmem>>, vector<256x256xbf16>,
    } else {
    }
    return
  }
  func.func @transform_0(%arg0: i32, %arg1: i32, %arg2: i32) -> (i32, i32) {
    %c0_i32 = arith.constant 0 : i32
    return %arg0, %arg2 : i32, i32
  }
  func.func @transform_1(%arg0: i32, %arg1: i32, %arg2: i32) -> (i32, i32) {
    %c0_i32 = arith.constant 0 : i32
    return %arg2, %arg1 : i32, i32
  }
  func.func @transform_2(%arg0: i32, %arg1: i32, %arg2: i32) -> (i32, i32) {
    %c0_i32 = arith.constant 0 : i32
    %c0_i32_0 = arith.constant 0 : i32
    return %c0_i32, %arg1 : i32, i32
  }
  func.func @transform_3(%arg0: i32, %arg1: i32, %arg2: i32) -> (i32, i32) {
    %c0_i32 = arith.constant 0 : i32
    return %arg0, %arg1 : i32, i32
  }
}

</mosaic_0001>

<llo_original>
// kernel: tpu_custom_call.1
$region0: #{tpu_custom_call.1}
  #allocation0 [shape = 'u32[]', space=smem, size = 0x4, offset = 0x4, fixed_abs, tag = 'smem constant byte address 0x4 - core index']
  #allocation1 [shape = 'u32[72,128]{1,0:T(1,128)}', space=vmem, size = 0x9000, scoped, tag = 'internal scratch']
  #allocation2 [shape = 'f32[256,256]{1,0:T(8,128)}', space=vmem, size = 0x40000, scoped, tag = 'scratch operand']
  %s0 = inlined_call_operand.vmem [shape: bf16[512,32], index: 0, kind: input, shape index: {}]
  %s1 = inlined_call_operand.vmem [shape: bf16[32,512], index: 1, kind: input, shape index: {}]
  %s2 = inlined_call_operand.vmem [shape: f32[1,512], index: 2, kind: input, shape index: {}]
  %s3 = inlined_call_operand.hbm [shape: bf16[512,512], index: 3, kind: output, shape index: {}]
  %s4 = sld [smem:[#allocation0]]
  $region91: #{tpu_custom_call.1} parent=0
    _
  %s6 = ssub.s32 1, %s4
  %s7 = scalar_select 0, %s6, %s4
  $region1: #{tpu_custom_call.1} parent=0
    #allocation3 [shape = 'u8[32768]{0}', space=vmem, size = 0x8000, scoped, tag = 'input window, operand 1']
    #allocation4 [shape = 'u8[262144]{0}', space=vmem, size = 0x40000, scoped, tag = 'output window, operand 0']
    #allocation5 [shape = 's32[2]{0}', space=sflag, size = 0x8, scoped, tag = 'scoped memory for tpu_custom_call.1']
    %8 = vsyncpa [#allocation5], 0
    %s9 = scalar_lea.sflag [#allocation5], 1
    %10 = vsyncpa %s9, 0
    loop: start=0, step=1, limit=6
    $region2: #{tpu_custom_call.1} parent=1 // loop_pre_header
      _
    $region3: #{tpu_custom_call.1} parent=1 // loop_header
      %s12 = sphi 0, %s16
      %p13 = scmp.ge.s32.totalorder %s12, 6
      %s19 = sphi 0, %s38
      %s20 = sphi 0, %s34
      %s21 = sphi 0, %s30
      %s22 = sphi 0, %s19
      %s23 = sphi 0, %s20
      %s24 = sphi 0, %s21
      %s25 = sphi 0, %s22
      %s26 = sphi 0, %s23
      %s27 = sphi 0, %s24
      %s43 = sphi 0, %s45
      %s46 = sphi 0, %s43
      %s47 = sphi 0, %s46
      %s63 = sphi 0, %s47
      %s71 = sphi 0, %s73
      %s74 = sphi 0, %s71
      %s75 = sphi 0, %s74
      %s91 = sphi 0, %s75
      %s97 = sphi 0, %s99
      %s100 = sphi 0, %s97
      %s101 = sphi 0, %s100
      %s117 = sphi 0, %s101
      %s125 = sphi 0, %s127
      %s128 = sphi 0, %s125
      %s129 = sphi 0, %s128
      %s145 = sphi 0, %s129
    $region4: #{tpu_custom_call.1} parent=1 // loop_header_branch
      %15 = sbr.rel (%p13) target = $region8
    $region5: #{tpu_custom_call.1} parent=1 // loop_body
      %s17 = ssub.s32 %s12, 1
      %s18 = ssub.s32 %s12, 2
      %s28 = sadd.s32 1, %s21
      %p29 = scmp.ge.s32.totalorder %s28, 1
      %s30 = scalar_select %p29, 0, %s28
      %s31 = sadd.s32 1, %s20
      %s32 = scalar_select %p29, %s31, %s20
      %p33 = scmp.ge.s32.totalorder %s32, 2
      %s34 = scalar_select %p33, 0, %s32
      %s35 = sadd.s32 1, %s19
      %s36 = scalar_select %p33, %s35, %s19
      %p37 = scmp.ge.s32.totalorder %s36, 2
      %s38 = scalar_select %p37, 0, %s36
      %s39 = ssub.s32 %s19, %s38
      %s40 = ssub.s32 %s21, %s30
      %s41 = sor.u32 %s39, %s40
      %p42 = scmp.eq.s32.totalorder %s41, 0
      %s44 = sadd.s32 %s43, 1
      %s45 = scalar_select %p42, %s43, %s44
      %p48 = pneg %p42
      %p49 = scmp.eq.s32.totalorder %s12, 3
      %p50 = por %p48, %p49
      %p51 = scmp.ne.s32.totalorder %s43, %s46
      %p52 = scmp.eq.s32.totalorder %s12, 0
      %p53 = por %p51, %p52
      %p54 = scmp.ne.s32.totalorder %s43, %s46
      %p55 = scmp.eq.s32.totalorder %s17, 3
      %p56 = por %p54, %p55
      %p57 = scmp.ne.s32.totalorder %s46, %s47
      %p58 = scmp.eq.s32.totalorder %s17, 0
      %p59 = por %p57, %p58
      %p60 = scmp.ne.s32.totalorder %s46, %s47
      %p61 = scmp.eq.s32.totalorder %s18, 3
      %p62 = por %p60, %p61
      %p64 = scmp.ne.s32.totalorder %s47, %s63
      %p65 = scmp.eq.s32.totalorder %s18, 0
      %p66 = por %p64, %p65
      %s67 = ssub.s32 %s21, %s30
      %s68 = ssub.s32 %s20, %s34
      %s69 = sor.u32 %s67, %s68
      %p70 = scmp.eq.s32.totalorder %s69, 0
      %s72 = sadd.s32 %s71, 1
      %s73 = scalar_select %p70, %s71, %s72
      %p76 = pneg %p70
      %p77 = scmp.eq.s32.totalorder %s12, 3
      %p78 = por %p76, %p77
      %p79 = scmp.ne.s32.totalorder %s71, %s74
      %p80 = scmp.eq.s32.totalorder %s12, 0
      %p81 = por %p79, %p80
      %p82 = scmp.ne.s32.totalorder %s71, %s74
      %p83 = scmp.eq.s32.totalorder %s17, 3
      %p84 = por %p82, %p83
      %p85 = scmp.ne.s32.totalorder %s74, %s75
      %p86 = scmp.eq.s32.totalorder %s17, 0
      %p87 = por %p85, %p86
      %p88 = scmp.ne.s32.totalorder %s74, %s75
      %p89 = scmp.eq.s32.totalorder %s18, 3
      %p90 = por %p88, %p89
      %p92 = scmp.ne.s32.totalorder %s75, %s91
      %p93 = scmp.eq.s32.totalorder %s18, 0
      %p94 = por %p92, %p93
      %s95 = ssub.s32 %s20, %s34
      %p96 = scmp.eq.s32.totalorder %s95, 0
      %s98 = sadd.s32 %s97, 1
      %s99 = scalar_select %p96, %s97, %s98
      %p102 = pneg %p96
      %p103 = scmp.eq.s32.totalorder %s12, 3
      %p104 = por %p102, %p103
      %p105 = scmp.ne.s32.totalorder %s97, %s100
      %p106 = scmp.eq.s32.totalorder %s12, 0
      %p107 = por %p105, %p106
      %p108 = scmp.ne.s32.totalorder %s97, %s100
      %p109 = scmp.eq.s32.totalorder %s17, 3
      %p110 = por %p108, %p109
      %p111 = scmp.ne.s32.totalorder %s100, %s101
      %p112 = scmp.eq.s32.totalorder %s17, 0
      %p113 = por %p111, %p112
      %p114 = scmp.ne.s32.totalorder %s100, %s101
      %p115 = scmp.eq.s32.totalorder %s18, 3
      %p116 = por %p114, %p115
      %p118 = scmp.ne.s32.totalorder %s101, %s117
      %p119 = scmp.eq.s32.totalorder %s18, 0
      %p120 = por %p118, %p119
      %s121 = ssub.s32 %s19, %s38
      %s122 = ssub.s32 %s20, %s34
      %s123 = sor.u32 %s121, %s122
      %p124 = scmp.eq.s32.totalorder %s123, 0
      %s126 = sadd.s32 %s125, 1
      %s127 = scalar_select %p124, %s125, %s126
      %p130 = pneg %p124
      %p131 = scmp.eq.s32.totalorder %s12, 3
      %p132 = por %p130, %p131
      %p133 = scmp.ne.s32.totalorder %s125, %s128
      %p134 = scmp.eq.s32.totalorder %s12, 0
      %p135 = por %p133, %p134
      %p136 = scmp.ne.s32.totalorder %s125, %s128
      %p137 = scmp.eq.s32.totalorder %s17, 3
      %p138 = por %p136, %p137
      %p139 = scmp.ne.s32.totalorder %s128, %s129
      %p140 = scmp.eq.s32.totalorder %s17, 0
      %p141 = por %p139, %p140
      %p142 = scmp.ne.s32.totalorder %s128, %s129
      %p143 = scmp.eq.s32.totalorder %s18, 3
      %p144 = por %p142, %p143
      %p146 = scmp.ne.s32.totalorder %s129, %s145
      %p147 = scmp.eq.s32.totalorder %s18, 0
      %p148 = por %p146, %p147
      %p149 = scmp.le.s32.totalorder 1, %s12
      %p150 = scmp.lt.s32.totalorder %s12, 5
      %p151 = pnand %p149, %p150
      %p152 = pneg %p151
      // Predicated region
      $region9: #{tpu_custom_call.1} parent=5 // pred_check
        _
      $region10: #{tpu_custom_call.1} parent=5 // pred_check_branch
        %154 = sbr.rel (%p151) target = $region12
      $region11: #{tpu_custom_call.1} parent=5 // pred_region
        %s155 = ssub.s32 %s12, 1
      $region12: #{tpu_custom_call.1} parent=5 // pred_fallthru
        _
      %p156 = scmp.lt.s32.totalorder %s12, 4
      // Predicated region
      $region13: #{tpu_custom_call.1} parent=5 // pred_check
        %p157 = pneg %p156
      $region14: #{tpu_custom_call.1} parent=5 // pred_check_branch
        %159 = sbr.rel (%p157) target = $region16
      $region15: #{tpu_custom_call.1} parent=5 // pred_region
        // Predicated region
        $region17: #{tpu_custom_call.1} parent=15 // pred_check
          %p160 = pneg %p53
        $region18: #{tpu_custom_call.1} parent=15 // pred_check_branch
          %162 = sbr.rel (%p160) target = $region20
        $region19: #{tpu_custom_call.1} parent=15 // pred_region
          %s163 = smul.u32 32, %s19
          %p164 = scmp.lt.s32.totalorder %s163, 63
          %s165 = scalar_select %p164, %s163, 63
          %p166 = scmp.lt.s32.totalorder %s21, 0
          %s167 = scalar_select %p166, %s21, 0
          %s168 = sadd.s32 %s167, %s165
          %s169 = smul.addr %s168, 4
          %s170 = scalar_lea.vmem %s0, %s169
          %s171 = smul.u32 32, %s19
        $region20: #{tpu_custom_call.1} parent=15 // pred_fallthru
          _
        // Predicated region
        $region21: #{tpu_custom_call.1} parent=15 // pred_check
          %p172 = pneg %p81
        $region22: #{tpu_custom_call.1} parent=15 // pred_check_branch
          %174 = sbr.rel (%p172) target = $region24
        $region23: #{tpu_custom_call.1} parent=15 // pred_region
          %s175 = sand.u32 %s71, 1
          %s176 = sand.u32 %s71, 1
          %s177 = smul.addr %s176, 32
          %s178 = scalar_lea.vmem [#allocation3], %s177
          %s179 = smul.u32 4, %s21
          %s180 = smul.u32 2, %s20
          %s181 = smul.addr %s179, 4
          %s182 = sadd.s32 %s180, %s181
          %s183 = smul.addr %s182, 4
          %s184 = scalar_lea.vmem %s1, %s183
          // Predicated region
          $region25: #{tpu_custom_call.1} parent=23 // pred_check
            _
          $region26: #{tpu_custom_call.1} parent=23 // pred_check_branch
            %186 = sbr.rel (0) target = $region28
          $region27: #{tpu_custom_call.1} parent=23 // pred_region
            // Predicated region
            $region29: #{tpu_custom_call.1} parent=27 // pred_check
              _
            $region30: #{tpu_custom_call.1} parent=27 // pred_check_branch
              %188 = sbr.rel (0) target = $region32
            $region31: #{tpu_custom_call.1} parent=27 // pred_region
              // Predicated region
              $region44: #{tpu_custom_call.1} parent=31 // pred_check
                _
              $region45: #{tpu_custom_call.1} parent=31 // pred_check_branch
                %210 = sbr.rel (0) target = $region47
              $region46: #{tpu_custom_call.1} parent=31 // pred_region
                loop: start=0, step=1, limit=1
                $region48: #{tpu_custom_call.1} parent=46 // loop_pre_header
                  _
                $region49: #{tpu_custom_call.1} parent=46 // loop_header
                  %s212 = sphi 0, %s216
                  %p213 = scmp.ge.s32.totalorder %s212, 1
                  %s217 = sphi %s184, %s184
                  %s218 = sphi %s178, %s178
                $region50: #{tpu_custom_call.1} parent=46 // loop_header_branch
                  %215 = sbr.rel (%p213) target = $region54
                $region51: #{tpu_custom_call.1} parent=46 // loop_body
                  %v219 = vld [vmem:[%s217] sm:$0xff]
                  %220 = vst [vmem:[%s218] sm:$0xff] %v219
                  %v221 = vld [vmem:[%s217 + $0x10] sm:$0xff]
                  %222 = vst [vmem:[%s218 + $0x8] sm:$0xff] %v221
                  %v223 = vld [vmem:[%s217 + $0x20] sm:$0xff]
                  %224 = vst [vmem:[%s218 + $0x10] sm:$0xff] %v223
                  %v225 = vld [vmem:[%s217 + $0x30] sm:$0xff]
                  %226 = vst [vmem:[%s218 + $0x18] sm:$0xff] %v225
                $region52: #{tpu_custom_call.1} parent=46 // loop_footer
                  %s216 = sadd.s32 1, %s212
                $region53: #{tpu_custom_call.1} parent=46 // loop_footer_branch
                  %211 = sbr.rel target = $region49
                $region54: #{tpu_custom_call.1} parent=46 // loop_exit
                  _
              $region47: #{tpu_custom_call.1} parent=31 // pred_fallthru
                _
              // Predicated region
              $region55: #{tpu_custom_call.1} parent=31 // pred_check
                _
              $region56: #{tpu_custom_call.1} parent=31 // pred_check_branch
                %228 = sbr.rel target = $region58
              $region57: #{tpu_custom_call.1} parent=31 // pred_region
                _
              $region58: #{tpu_custom_call.1} parent=31 // pred_fallthru
                _
            $region32: #{tpu_custom_call.1} parent=27 // pred_fallthru
              _
            // Predicated region
            $region33: #{tpu_custom_call.1} parent=27 // pred_check
              _
            $region34: #{tpu_custom_call.1} parent=27 // pred_check_branch
              %190 = sbr.rel target = $region36
            $region35: #{tpu_custom_call.1} parent=27 // pred_region
              %s192 = ssub.s32 256, 1
              loop: start=0, step=1, limit=1
              $region37: #{tpu_custom_call.1} parent=35 // loop_pre_header
                _
              $region38: #{tpu_custom_call.1} parent=35 // loop_header
                %s194 = sphi 0, %s198
                %p195 = scmp.ge.s32.totalorder %s194, 1
                %s199 = sphi %s184, %s184
                %s200 = sphi %s178, %s178
              $region39: #{tpu_custom_call.1} parent=35 // loop_header_branch
                %197 = sbr.rel (%p195) target = $region43
              $region40: #{tpu_custom_call.1} parent=35 // loop_body
                %v201 = vld [vmem:[%s199] sm:%s192]
                %202 = vst [vmem:[%s200] sm:%s192] %v201
                %v203 = vld [vmem:[%s199 + $0x10] sm:%s192]
                %204 = vst [vmem:[%s200 + $0x8] sm:%s192] %v203
                %v205 = vld [vmem:[%s199 + $0x20] sm:%s192]
                %206 = vst [vmem:[%s200 + $0x10] sm:%s192] %v205
                %v207 = vld [vmem:[%s199 + $0x30] sm:%s192]
                %208 = vst [vmem:[%s200 + $0x18] sm:%s192] %v207
              $region41: #{tpu_custom_call.1} parent=35 // loop_footer
                %s198 = sadd.s32 1, %s194
              $region42: #{tpu_custom_call.1} parent=35 // loop_footer_branch
                %193 = sbr.rel target = $region38
              $region43: #{tpu_custom_call.1} parent=35 // loop_exit
                _
            $region36: #{tpu_custom_call.1} parent=27 // pred_fallthru
              _
          $region28: #{tpu_custom_call.1} parent=23 // pred_fallthru
            _
          %229 = vnop
        $region24: #{tpu_custom_call.1} parent=15 // pred_fallthru
          _
        // Predicated region
        $region59: #{tpu_custom_call.1} parent=15 // pred_check
          %p230 = pneg %p107
        $region60: #{tpu_custom_call.1} parent=15 // pred_check_branch
          %232 = sbr.rel (%p230) target = $region62
        $region61: #{tpu_custom_call.1} parent=15 // pred_region
          %s233 = smul.u32 2, %s20
          %p234 = scmp.lt.s32.totalorder %s233, 3
          %s235 = scalar_select %p234, %s233, 3
          %s236 = scalar_lea.vmem %s2, %s235
          %s237 = smul.u32 2, %s20
        $region62: #{tpu_custom_call.1} parent=15 // pred_fallthru
          _
      $region16: #{tpu_custom_call.1} parent=5 // pred_fallthru
        _
      %p238 = scmp.le.s32.totalorder 1, %s12
      %p239 = scmp.lt.s32.totalorder %s12, 5
      %p240 = pnand %p238, %p239
      %p241 = pneg %p240
      // Predicated region
      $region63: #{tpu_custom_call.1} parent=5 // pred_check
        _
      $region64: #{tpu_custom_call.1} parent=5 // pred_check_branch
        %243 = sbr.rel (%p240) target = $region66
      $region65: #{tpu_custom_call.1} parent=5 // pred_region
        %s244 = ssub.s32 %s12, 1
        %s245 = sand.u32 %s74, 1
        %s246 = sand.u32 %s74, 1
        %s247 = smul.addr %s246, 32
        %s248 = scalar_lea.vmem [#allocation3], %s247
        // Predicated region
        $region67: #{tpu_custom_call.1} parent=65 // pred_check
          %p249 = pneg %p87
        $region68: #{tpu_custom_call.1} parent=65 // pred_check_branch
          %251 = sbr.rel (%p249) target = $region70
        $region69: #{tpu_custom_call.1} parent=65 // pred_region
          _
        $region70: #{tpu_custom_call.1} parent=65 // pred_fallthru
          _
        %s252 = smul.u32 32, %s22
        %p253 = scmp.lt.s32.totalorder %s252, 63
        %s254 = scalar_select %p253, %s252, 63
        %p255 = scmp.lt.s32.totalorder %s24, 0
        %s256 = scalar_select %p255, %s24, 0
        %s257 = sadd.s32 %s256, %s254
        %s258 = smul.addr %s257, 4
        %s259 = scalar_lea.vmem %s0, %s258
        %p260 = pneg %p59
        %p261 = pneg %p56
        %s262 = sand.u32 %s74, 1
        %s263 = sand.u32 %s74, 1
        %s264 = smul.addr %s263, 32
        %s265 = scalar_lea.vmem [#allocation3], %s264
        %p266 = pneg %p87
        %p267 = pneg %p84
        %s268 = smul.u32 2, %s23
        %p269 = scmp.lt.s32.totalorder %s268, 3
        %s270 = scalar_select %p269, %s268, 3
        %s271 = scalar_lea.vmem %s2, %s270
        %p272 = pneg %p113
        %p273 = pneg %p110
        %p274 = pneg %p141
        %p275 = pneg %p138
        %s276 = sand.u32 %s128, 1
        %s277 = scalar_lea.sflag [#allocation5], %s276
        %s278 = sand.u32 %s128, 1
        %s279 = smul.addr %s278, 256
        %s280 = scalar_lea.vmem [#allocation4], %s279
        %s281 = smul.u32 32, %s22
        %p282 = scmp.lt.s32.totalorder %s281, 63
        %s283 = scalar_select %p282, %s281, 63
        %p284 = scmp.lt.s32.totalorder %s24, 0
        %s285 = scalar_select %p284, %s24, 0
        %s286 = sadd.s32 %s285, %s283
        %s287 = smul.addr %s286, 4
        %s288 = scalar_lea.vmem %s0, %s287
        %s289 = smul.u32 32, %s22
        %s290 = smul.u32 4, %s24
        %s291 = smul.u32 2, %s23
        %s292 = smul.u32 2, %s23
        %p293 = scmp.lt.s32.totalorder %s292, 3
        %s294 = scalar_select %p293, %s292, 3
        %s295 = scalar_lea.vmem %s2, %s294
        %s296 = smul.u32 2, %s23
        %s297 = smul.u32 32, %s22
        %s298 = smul.u32 2, %s23
        %p300 = scmp.eq.s32.totalorder %s24, 0
        // Predicated region
        $region71: #{tpu_custom_call.1} parent=65 // pred_check
          %p301 = pneg %p300
        $region72: #{tpu_custom_call.1} parent=65 // pred_check_branch
          %303 = sbr.rel (%p301) target = $region74
        $region73: #{tpu_custom_call.1} parent=65 // pred_region
          %304 = vst [vmem:[#allocation2] sm:$0xff] 0.0
          %305 = vst [vmem:[#allocation2 + $0x8] sm:$0xff] 0.0
          %306 = vst [vmem:[#allocation2 + $0x10] sm:$0xff] 0.0
          %307 = vst [vmem:[#allocation2 + $0x18] sm:$0xff] 0.0
          %308 = vst [vmem:[#allocation2 + $0x20] sm:$0xff] 0.0
          %309 = vst [vmem:[#allocation2 + $0x28] sm:$0xff] 0.0
          %310 = vst [vmem:[#allocation2 + $0x30] sm:$0xff] 0.0
          %311 = vst [vmem:[#allocation2 + $0x38] sm:$0xff] 0.0
          %312 = vst [vmem:[#allocation2 + $0x40] sm:$0xff] 0.0
          %313 = vst [vmem:[#allocation2 + $0x48] sm:$0xff] 0.0
          %314 = vst [vmem:[#allocation2 + $0x50] sm:$0xff] 0.0
          %315 = vst [vmem:[#allocation2 + $0x58] sm:$0xff] 0.0
          %316 = vst [vmem:[#allocation2 + $0x60] sm:$0xff] 0.0
          %317 = vst [vmem:[#allocation2 + $0x68] sm:$0xff] 0.0
          %318 = vst [vmem:[#allocation2 + $0x70] sm:$0xff] 0.0
          %319 = vst [vmem:[#allocation2 + $0x78] sm:$0xff] 0.0
          %320 = vst [vmem:[#allocation2 + $0x80] sm:$0xff] 0.0
          %321 = vst [vmem:[#allocation2 + $0x88] sm:$0xff] 0.0
          %322 = vst [vmem:[#allocation2 + $0x90] sm:$0xff] 0.0
          %323 = vst [vmem:[#allocation2 + $0x98] sm:$0xff] 0.0
          %324 = vst [vmem:[#allocation2 + $0xa0] sm:$0xff] 0.0
          %325 = vst [vmem:[#allocation2 + $0xa8] sm:$0xff] 0.0
          %326 = vst [vmem:[#allocation2 + $0xb0] sm:$0xff] 0.0
          %327 = vst [vmem:[#allocation2 + $0xb8] sm:$0xff] 0.0
          %328 = vst [vmem:[#allocation2 + $0xc0] sm:$0xff] 0.0
          %329 = vst [vmem:[#allocation2 + $0xc8] sm:$0xff] 0.0
          %330 = vst [vmem:[#allocation2 + $0xd0] sm:$0xff] 0.0
          %331 = vst [vmem:[#allocation2 + $0xd8] sm:$0xff] 0.0
          %332 = vst [vmem:[#allocation2 + $0xe0] sm:$0xff] 0.0
          %333 = vst [vmem:[#allocation2 + $0xe8] sm:$0xff] 0.0
          %334 = vst [vmem:[#allocation2 + $0xf0] sm:$0xff] 0.0
          %335 = vst [vmem:[#allocation2 + $0xf8] sm:$0xff] 0.0
          %336 = vst [vmem:[#allocation2 + $0x100] sm:$0xff] 0.0
          %337 = vst [vmem:[#allocation2 + $0x108] sm:$0xff] 0.0
          %338 = vst [vmem:[#allocation2 + $0x110] sm:$0xff] 0.0
          %339 = vst [vmem:[#allocation2 + $0x118] sm:$0xff] 0.0
          %340 = vst [vmem:[#allocation2 + $0x120] sm:$0xff] 0.0
          %341 = vst [vmem:[#allocation2 + $0x128] sm:$0xff] 0.0
          %342 = vst [vmem:[#allocation2 + $0x130] sm:$0xff] 0.0
          %343 = vst [vmem:[#allocation2 + $0x138] sm:$0xff] 0.0
          %344 = vst [vmem:[#allocation2 + $0x140] sm:$0xff] 0.0
          %345 = vst [vmem:[#allocation2 + $0x148] sm:$0xff] 0.0
          %346 = vst [vmem:[#allocation2 + $0x150] sm:$0xff] 0.0
          %347 = vst [vmem:[#allocation2 + $0x158] sm:$0xff] 0.0
          %348 = vst [vmem:[#allocation2 + $0x160] sm:$0xff] 0.0
          %349 = vst [vmem:[#allocation2 + $0x168] sm:$0xff] 0.0
          %350 = vst [vmem:[#allocation2 + $0x170] sm:$0xff] 0.0
          %351 = vst [vmem:[#allocation2 + $0x178] sm:$0xff] 0.0
          %352 = vst [vmem:[#allocation2 + $0x180] sm:$0xff] 0.0
          %353 = vst [vmem:[#allocation2 + $0x188] sm:$0xff] 0.0
          %354 = vst [vmem:[#allocation2 + $0x190] sm:$0xff] 0.0
          %355 = vst [vmem:[#allocation2 + $0x198] sm:$0xff] 0.0
          %356 = vst [vmem:[#allocation2 + $0x1a0] sm:$0xff] 0.0
          %357 = vst [vmem:[#allocation2 + $0x1a8] sm:$0xff] 0.0
          %358 = vst [vmem:[#allocation2 + $0x1b0] sm:$0xff] 0.0
          %359 = vst [vmem:[#allocation2 + $0x1b8] sm:$0xff] 0.0
          %360 = vst [vmem:[#allocation2 + $0x1c0] sm:$0xff] 0.0
          %361 = vst [vmem:[#allocation2 + $0x1c8] sm:$0xff] 0.0
          %362 = vst [vmem:[#allocation2 + $0x1d0] sm:$0xff] 0.0
          %363 = vst [vmem:[#allocation2 + $0x1d8] sm:$0xff] 0.0
          %364 = vst [vmem:[#allocation2 + $0x1e0] sm:$0xff] 0.0
          %365 = vst [vmem:[#allocation2 + $0x1e8] sm:$0xff] 0.0
          %366 = vst [vmem:[#allocation2 + $0x1f0] sm:$0xff] 0.0
          %367 = vst [vmem:[#allocation2 + $0x1f8] sm:$0xff] 0.0
        $region74: #{tpu_custom_call.1} parent=65 // pred_fallthru
          _
        %v368 = vld [vmem:[#allocation2] sm:$0xff]
        %v369 = vld [vmem:[#allocation2 + $0x8] sm:$0xff]
        %v370 = vld [vmem:[#allocation2 + $0x10] sm:$0xff]
        %v371 = vld [vmem:[#allocation2 + $0x18] sm:$0xff]
        %v372 = vld [vmem:[#allocation2 + $0x20] sm:$0xff]
        %v373 = vld [vmem:[#allocation2 + $0x28] sm:$0xff]
        %v374 = vld [vmem:[#allocation2 + $0x30] sm:$0xff]
        %v375 = vld [vmem:[#allocation2 + $0x38] sm:$0xff]
        %v376 = vld [vmem:[#allocation2 + $0x40] sm:$0xff]
        %v377 = vld [vmem:[#allocation2 + $0x48] sm:$0xff]
        %v378 = vld [vmem:[#allocation2 + $0x50] sm:$0xff]
        %v379 = vld [vmem:[#allocation2 + $0x58] sm:$0xff]
        %v380 = vld [vmem:[#allocation2 + $0x60] sm:$0xff]
        %v381 = vld [vmem:[#allocation2 + $0x68] sm:$0xff]
        %v382 = vld [vmem:[#allocation2 + $0x70] sm:$0xff]
        %v383 = vld [vmem:[#allocation2 + $0x78] sm:$0xff]
        %v384 = vld [vmem:[#allocation2 + $0x80] sm:$0xff]
        %v385 = vld [vmem:[#allocation2 + $0x88] sm:$0xff]
        %v386 = vld [vmem:[#allocation2 + $0x90] sm:$0xff]
        %v387 = vld [vmem:[#allocation2 + $0x98] sm:$0xff]
        %v388 = vld [vmem:[#allocation2 + $0xa0] sm:$0xff]
        %v389 = vld [vmem:[#allocation2 + $0xa8] sm:$0xff]
        %v390 = vld [vmem:[#allocation2 + $0xb0] sm:$0xff]
        %v391 = vld [vmem:[#allocation2 + $0xb8] sm:$0xff]
        %v392 = vld [vmem:[#allocation2 + $0xc0] sm:$0xff]
        %v393 = vld [vmem:[#allocation2 + $0xc8] sm:$0xff]
        %v394 = vld [vmem:[#allocation2 + $0xd0] sm:$0xff]
        %v395 = vld [vmem:[#allocation2 + $0xd8] sm:$0xff]
        %v396 = vld [vmem:[#allocation2 + $0xe0] sm:$0xff]
        %v397 = vld [vmem:[#allocation2 + $0xe8] sm:$0xff]
        %v398 = vld [vmem:[#allocation2 + $0xf0] sm:$0xff]
        %v399 = vld [vmem:[#allocation2 + $0xf8] sm:$0xff]
        %v400 = vld [vmem:[#allocation2 + $0x100] sm:$0xff]
        %v401 = vld [vmem:[#allocation2 + $0x108] sm:$0xff]
        %v402 = vld [vmem:[#allocation2 + $0x110] sm:$0xff]
        %v403 = vld [vmem:[#allocation2 + $0x118] sm:$0xff]
        %v404 = vld [vmem:[#allocation2 + $0x120] sm:$0xff]
        %v405 = vld [vmem:[#allocation2 + $0x128] sm:$0xff]
        %v406 = vld [vmem:[#allocation2 + $0x130] sm:$0xff]
        %v407 = vld [vmem:[#allocation2 + $0x138] sm:$0xff]
        %v408 = vld [vmem:[#allocation2 + $0x140] sm:$0xff]
        %v409 = vld [vmem:[#allocation2 + $0x148] sm:$0xff]
        %v410 = vld [vmem:[#allocation2 + $0x150] sm:$0xff]
        %v411 = vld [vmem:[#allocation2 + $0x158] sm:$0xff]
        %v412 = vld [vmem:[#allocation2 + $0x160] sm:$0xff]
        %v413 = vld [vmem:[#allocation2 + $0x168] sm:$0xff]
        %v414 = vld [vmem:[#allocation2 + $0x170] sm:$0xff]
        %v415 = vld [vmem:[#allocation2 + $0x178] sm:$0xff]
        %v416 = vld [vmem:[#allocation2 + $0x180] sm:$0xff]
        %v417 = vld [vmem:[#allocation2 + $0x188] sm:$0xff]
        %v418 = vld [vmem:[#allocation2 + $0x190] sm:$0xff]
        %v419 = vld [vmem:[#allocation2 + $0x198] sm:$0xff]
        %v420 = vld [vmem:[#allocation2 + $0x1a0] sm:$0xff]
        %v421 = vld [vmem:[#allocation2 + $0x1a8] sm:$0xff]
        %v422 = vld [vmem:[#allocation2 + $0x1b0] sm:$0xff]
        %v423 = vld [vmem:[#allocation2 + $0x1b8] sm:$0xff]
        %v424 = vld [vmem:[#allocation2 + $0x1c0] sm:$0xff]
        %v425 = vld [vmem:[#allocation2 + $0x1c8] sm:$0xff]
        %v426 = vld [vmem:[#allocation2 + $0x1d0] sm:$0xff]
        %v427 = vld [vmem:[#allocation2 + $0x1d8] sm:$0xff]
        %v428 = vld [vmem:[#allocation2 + $0x1e0] sm:$0xff]
        %v429 = vld [vmem:[#allocation2 + $0x1e8] sm:$0xff]
        %v430 = vld [vmem:[#allocation2 + $0x1f0] sm:$0xff]
        %v431 = vld [vmem:[#allocation2 + $0x1f8] sm:$0xff]
        %v432 = vld [vmem:[%s288] sm:$0xf]
        %v433 = vld [vmem:[%s288 + $0x4] sm:$0xf]
        %v434 = vld [vmem:[%s288 + $0x8] sm:$0xf]
        %v435 = vld [vmem:[%s288 + $0xc] sm:$0xf]
        %v436 = vld [vmem:[%s288 + $0x10] sm:$0xf]
        %v437 = vld [vmem:[%s288 + $0x14] sm:$0xf]
        %v438 = vld [vmem:[%s288 + $0x18] sm:$0xf]
        %v439 = vld [vmem:[%s288 + $0x1c] sm:$0xf]
        %v440 = vld [vmem:[%s288 + $0x20] sm:$0xf]
        %v441 = vld [vmem:[%s288 + $0x24] sm:$0xf]
        %v442 = vld [vmem:[%s288 + $0x28] sm:$0xf]
        %v443 = vld [vmem:[%s288 + $0x2c] sm:$0xf]
        %v444 = vld [vmem:[%s288 + $0x30] sm:$0xf]
        %v445 = vld [vmem:[%s288 + $0x34] sm:$0xf]
        %v446 = vld [vmem:[%s288 + $0x38] sm:$0xf]
        %v447 = vld [vmem:[%s288 + $0x3c] sm:$0xf]
        %v448 = vld [vmem:[%s288 + $0x40] sm:$0xf]
        %v449 = vld [vmem:[%s288 + $0x44] sm:$0xf]
        %v450 = vld [vmem:[%s288 + $0x48] sm:$0xf]
        %v451 = vld [vmem:[%s288 + $0x4c] sm:$0xf]
        %v452 = vld [vmem:[%s288 + $0x50] sm:$0xf]
        %v453 = vld [vmem:[%s288 + $0x54] sm:$0xf]
        %v454 = vld [vmem:[%s288 + $0x58] sm:$0xf]
        %v455 = vld [vmem:[%s288 + $0x5c] sm:$0xf]
        %v456 = vld [vmem:[%s288 + $0x60] sm:$0xf]
        %v457 = vld [vmem:[%s288 + $0x64] sm:$0xf]
        %v458 = vld [vmem:[%s288 + $0x68] sm:$0xf]
        %v459 = vld [vmem:[%s288 + $0x6c] sm:$0xf]
        %v460 = vld [vmem:[%s288 + $0x70] sm:$0xf]
        %v461 = vld [vmem:[%s288 + $0x74] sm:$0xf]
        %v462 = vld [vmem:[%s288 + $0x78] sm:$0xf]
        %v463 = vld [vmem:[%s288 + $0x7c] sm:$0xf]
        %v464 = vld [vmem:[%s248] sm:$0xff]
        %v465 = vld [vmem:[%s248 + $0x8] sm:$0xff]
        %v466 = vld [vmem:[%s248 + $0x10] sm:$0xff]
        %v467 = vld [vmem:[%s248 + $0x18] sm:$0xff]
        %v500 = vunpack.c.l.b16 %v432
        %v501 = vunpack.c.l.b16 %v433
        %v502 = vunpack.c.l.b16 %v434
        %v503 = vunpack.c.l.b16 %v435
        %v504 = vunpack.c.l.b16 %v436
        %v505 = vunpack.c.l.b16 %v437
        %v506 = vunpack.c.l.b16 %v438
        %v507 = vunpack.c.l.b16 %v439
        %v508 = vunpack.c.l.b16 %v440
        %v509 = vunpack.c.l.b16 %v441
        %v510 = vunpack.c.l.b16 %v442
        %v511 = vunpack.c.l.b16 %v443
        %v512 = vunpack.c.l.b16 %v444
        %v513 = vunpack.c.l.b16 %v445
        %v514 = vunpack.c.l.b16 %v446
        %v515 = vunpack.c.l.b16 %v447
        %v516 = vunpack.c.l.b16 %v448
        %v517 = vunpack.c.l.b16 %v449
        %v518 = vunpack.c.l.b16 %v450
        %v519 = vunpack.c.l.b16 %v451
        %v520 = vunpack.c.l.b16 %v452
        %v521 = vunpack.c.l.b16 %v453
        %v522 = vunpack.c.l.b16 %v454
        %v523 = vunpack.c.l.b16 %v455
        %v524 = vunpack.c.l.b16 %v456
        %v525 = vunpack.c.l.b16 %v457
        %v526 = vunpack.c.l.b16 %v458
        %v527 = vunpack.c.l.b16 %v459
        %v528 = vunpack.c.l.b16 %v460
        %v529 = vunpack.c.l.b16 %v461
        %v530 = vunpack.c.l.b16 %v462
        %v531 = vunpack.c.l.b16 %v463
        %v532 = vpack.c.b16 %v501, %v500
        %v533 = vpack.c.b16 %v503, %v502
        %v534 = vpack.c.b16 %v505, %v504
        %v535 = vpack.c.b16 %v507, %v506
        %v536 = vpack.c.b16 %v509, %v508
        %v537 = vpack.c.b16 %v511, %v510
        %v538 = vpack.c.b16 %v513, %v512
        %v539 = vpack.c.b16 %v515, %v514
        %v540 = vpack.c.b16 %v517, %v516
        %v541 = vpack.c.b16 %v519, %v518
        %v542 = vpack.c.b16 %v521, %v520
        %v543 = vpack.c.b16 %v523, %v522
        %v544 = vpack.c.b16 %v525, %v524
        %v545 = vpack.c.b16 %v527, %v526
        %v546 = vpack.c.b16 %v529, %v528
        %v547 = vpack.c.b16 %v531, %v530
        %v552 = vunpack.c.l.b16 %v464
        %v553 = vunpack.c.h.b16 %v464
        %v554 = vunpack.c.l.b16 %v465
        %v555 = vunpack.c.h.b16 %v465
        %v556 = vunpack.c.l.b16 %v466
        %v557 = vunpack.c.h.b16 %v466
        %v558 = vunpack.c.l.b16 %v467
        %v559 = vunpack.c.h.b16 %v467
        %v560 = vpack.c.b16 %v554, %v552
        %v561 = vpack.c.b16 %v555, %v553
        %v562 = vpack.c.b16 %v558, %v556
        %v563 = vpack.c.b16 %v559, %v557
        %vm568 = vcmask 261120
        %v570 = vsel %vm568, %v532, 0
        %v573 = vsel %vm568, %v533, 0
        %v576 = vsel %vm568, %v534, 0
        %v579 = vsel %vm568, %v535, 0
        %v582 = vsel %vm568, %v536, 0
        %v585 = vsel %vm568, %v537, 0
        %v588 = vsel %vm568, %v538, 0
        %v591 = vsel %vm568, %v539, 0
        %v594 = vsel %vm568, %v540, 0
        %v597 = vsel %vm568, %v541, 0
        %v600 = vsel %vm568, %v542, 0
        %v603 = vsel %vm568, %v543, 0
        %v606 = vsel %vm568, %v544, 0
        %v609 = vsel %vm568, %v545, 0
        %v612 = vsel %vm568, %v546, 0
        %v615 = vsel %vm568, %v547, 0
        %617 = vmatpush.bf16.msra.mxu0 0
        %618 = vmatpush.bf16.msra.mxu0 0
        %619 = vmatpush.bf16.msra.mxu0 0
        %620 = vmatpush.bf16.msra.mxu0 0
        %621 = vmatpush.bf16.msra.mxu0 0
        %622 = vmatpush.bf16.msra.mxu0 0
        %623 = vmatpush.bf16.msra.mxu0 %v562
        %624 = vmatpush.bf16.msra.mxu0 %v560
        %625 = vmatmul.bf16.gmra.mxu0 %v570
        %v626 = vpop.f32.mrf.mxu0
        %v627 = vadd.f32 0.0, %v626
        %v628 = vpop.f32.mrf.mxu0
        %v629 = vadd.f32 0.0, %v628
        %630 = vmatmul.bf16.gmra.mxu0 %v573
        %v631 = vpop.f32.mrf.mxu0
        %v632 = vadd.f32 0.0, %v631
        %v633 = vpop.f32.mrf.mxu0
        %v634 = vadd.f32 0.0, %v633
        %635 = vmatmul.bf16.gmra.mxu0 %v576
        %v636 = vpop.f32.mrf.mxu0
        %v637 = vadd.f32 0.0, %v636
        %v638 = vpop.f32.mrf.mxu0
        %v639 = vadd.f32 0.0, %v638
        %640 = vmatmul.bf16.gmra.mxu0 %v579
        %v641 = vpop.f32.mrf.mxu0
        %v642 = vadd.f32 0.0, %v641
        %v643 = vpop.f32.mrf.mxu0
        %v644 = vadd.f32 0.0, %v643
        %645 = vmatmul.bf16.gmra.mxu0 %v582
        %v646 = vpop.f32.mrf.mxu0
        %v647 = vadd.f32 0.0, %v646
        %v648 = vpop.f32.mrf.mxu0
        %v649 = vadd.f32 0.0, %v648
        %650 = vmatmul.bf16.gmra.mxu0 %v585
        %v651 = vpop.f32.mrf.mxu0
        %v652 = vadd.f32 0.0, %v651
        %v653 = vpop.f32.mrf.mxu0
        %v654 = vadd.f32 0.0, %v653
        %655 = vmatmul.bf16.gmra.mxu0 %v588
        %v656 = vpop.f32.mrf.mxu0
        %v657 = vadd.f32 0.0, %v656
        %v658 = vpop.f32.mrf.mxu0
        %v659 = vadd.f32 0.0, %v658
        %660 = vmatmul.bf16.gmra.mxu0 %v591
        %v661 = vpop.f32.mrf.mxu0
        %v662 = vadd.f32 0.0, %v661
        %v663 = vpop.f32.mrf.mxu0
        %v664 = vadd.f32 0.0, %v663
        %665 = vmatmul.bf16.gmra.mxu0 %v594
        %v666 = vpop.f32.mrf.mxu0
        %v667 = vadd.f32 0.0, %v666
        %v668 = vpop.f32.mrf.mxu0
        %v669 = vadd.f32 0.0, %v668
        %670 = vmatmul.bf16.gmra.mxu0 %v597
        %v671 = vpop.f32.mrf.mxu0
        %v672 = vadd.f32 0.0, %v671
        %v673 = vpop.f32.mrf.mxu0
        %v674 = vadd.f32 0.0, %v673
        %675 = vmatmul.bf16.gmra.mxu0 %v600
        %v676 = vpop.f32.mrf.mxu0
        %v677 = vadd.f32 0.0, %v676
        %v678 = vpop.f32.mrf.mxu0
        %v679 = vadd.f32 0.0, %v678
        %680 = vmatmul.bf16.gmra.mxu0 %v603
        %v681 = vpop.f32.mrf.mxu0
        %v682 = vadd.f32 0.0, %v681
        %v683 = vpop.f32.mrf.mxu0
        %v684 = vadd.f32 0.0, %v683
        %685 = vmatmul.bf16.gmra.mxu0 %v606
        %v686 = vpop.f32.mrf.mxu0
        %v687 = vadd.f32 0.0, %v686
        %v688 = vpop.f32.mrf.mxu0
        %v689 = vadd.f32 0.0, %v688
        %690 = vmatmul.bf16.gmra.mxu0 %v609
        %v691 = vpop.f32.mrf.mxu0
        %v692 = vadd.f32 0.0, %v691
        %v693 = vpop.f32.mrf.mxu0
        %v694 = vadd.f32 0.0, %v693
        %695 = vmatmul.bf16.gmra.mxu0 %v612
        %v696 = vpop.f32.mrf.mxu0
        %v697 = vadd.f32 0.0, %v696
        %v698 = vpop.f32.mrf.mxu0
        %v699 = vadd.f32 0.0, %v698
        %700 = vmatmul.bf16.gmra.mxu0 %v615
        %v701 = vpop.f32.mrf.mxu0
        %v702 = vadd.f32 0.0, %v701
        %v703 = vpop.f32.mrf.mxu0
        %v704 = vadd.f32 0.0, %v703
        %705 = vdwg.mxu0
        %706 = vmatpush.bf16.msra.mxu0 0
        %707 = vmatpush.bf16.msra.mxu0 0
        %708 = vmatpush.bf16.msra.mxu0 0
        %709 = vmatpush.bf16.msra.mxu0 0
        %710 = vmatpush.bf16.msra.mxu0 0
        %711 = vmatpush.bf16.msra.mxu0 0
        %712 = vmatpush.bf16.msra.mxu0 %v563
        %713 = vmatpush.bf16.msra.mxu0 %v561
        %714 = vmatmul.bf16.gmra.mxu0 %v570
        %v715 = vpop.f32.mrf.mxu0
        %v716 = vadd.f32 0.0, %v715
        %v717 = vpop.f32.mrf.mxu0
        %v718 = vadd.f32 0.0, %v717
        %719 = vmatmul.bf16.gmra.mxu0 %v573
        %v720 = vpop.f32.mrf.mxu0
        %v721 = vadd.f32 0.0, %v720
        %v722 = vpop.f32.mrf.mxu0
        %v723 = vadd.f32 0.0, %v722
        %724 = vmatmul.bf16.gmra.mxu0 %v576
        %v725 = vpop.f32.mrf.mxu0
        %v726 = vadd.f32 0.0, %v725
        %v727 = vpop.f32.mrf.mxu0
        %v728 = vadd.f32 0.0, %v727
        %729 = vmatmul.bf16.gmra.mxu0 %v579
        %v730 = vpop.f32.mrf.mxu0
        %v731 = vadd.f32 0.0, %v730
        %v732 = vpop.f32.mrf.mxu0
        %v733 = vadd.f32 0.0, %v732
        %734 = vmatmul.bf16.gmra.mxu0 %v582
        %v735 = vpop.f32.mrf.mxu0
        %v736 = vadd.f32 0.0, %v735
        %v737 = vpop.f32.mrf.mxu0
        %v738 = vadd.f32 0.0, %v737
        %739 = vmatmul.bf16.gmra.mxu0 %v585
        %v740 = vpop.f32.mrf.mxu0
        %v741 = vadd.f32 0.0, %v740
        %v742 = vpop.f32.mrf.mxu0
        %v743 = vadd.f32 0.0, %v742
        %744 = vmatmul.bf16.gmra.mxu0 %v588
        %v745 = vpop.f32.mrf.mxu0
        %v746 = vadd.f32 0.0, %v745
        %v747 = vpop.f32.mrf.mxu0
        %v748 = vadd.f32 0.0, %v747
        %749 = vmatmul.bf16.gmra.mxu0 %v591
        %v750 = vpop.f32.mrf.mxu0
        %v751 = vadd.f32 0.0, %v750
        %v752 = vpop.f32.mrf.mxu0
        %v753 = vadd.f32 0.0, %v752
        %754 = vmatmul.bf16.gmra.mxu0 %v594
        %v755 = vpop.f32.mrf.mxu0
        %v756 = vadd.f32 0.0, %v755
        %v757 = vpop.f32.mrf.mxu0
        %v758 = vadd.f32 0.0, %v757
        %759 = vmatmul.bf16.gmra.mxu0 %v597
        %v760 = vpop.f32.mrf.mxu0
        %v761 = vadd.f32 0.0, %v760
        %v762 = vpop.f32.mrf.mxu0
        %v763 = vadd.f32 0.0, %v762
        %764 = vmatmul.bf16.gmra.mxu0 %v600
        %v765 = vpop.f32.mrf.mxu0
        %v766 = vadd.f32 0.0, %v765
        %v767 = vpop.f32.mrf.mxu0
        %v768 = vadd.f32 0.0, %v767
        %769 = vmatmul.bf16.gmra.mxu0 %v603
        %v770 = vpop.f32.mrf.mxu0
        %v771 = vadd.f32 0.0, %v770
        %v772 = vpop.f32.mrf.mxu0
        %v773 = vadd.f32 0.0, %v772
        %774 = vmatmul.bf16.gmra.mxu0 %v606
        %v775 = vpop.f32.mrf.mxu0
        %v776 = vadd.f32 0.0, %v775
        %v777 = vpop.f32.mrf.mxu0
        %v778 = vadd.f32 0.0, %v777
        %779 = vmatmul.bf16.gmra.mxu0 %v609
        %v780 = vpop.f32.mrf.mxu0
        %v781 = vadd.f32 0.0, %v780
        %v782 = vpop.f32.mrf.mxu0
        %v783 = vadd.f32 0.0, %v782
        %784 = vmatmul.bf16.gmra.mxu0 %v612
        %v785 = vpop.f32.mrf.mxu0
        %v786 = vadd.f32 0.0, %v785
        %v787 = vpop.f32.mrf.mxu0
        %v788 = vadd.f32 0.0, %v787
        %789 = vmatmul.bf16.gmra.mxu0 %v615
        %v790 = vpop.f32.mrf.mxu0
        %v791 = vadd.f32 0.0, %v790
        %v792 = vpop.f32.mrf.mxu0
        %v793 = vadd.f32 0.0, %v792
        %794 = vdwg.mxu0
        %v795 = vadd.f32 %v368, %v627
        %v796 = vadd.f32 %v369, %v716
        %v797 = vadd.f32 %v370, %v629
        %v798 = vadd.f32 %v371, %v718
        %v799 = vadd.f32 %v372, %v632
        %v800 = vadd.f32 %v373, %v721
        %v801 = vadd.f32 %v374, %v634
        %v802 = vadd.f32 %v375, %v723
        %v803 = vadd.f32 %v376, %v637
        %v804 = vadd.f32 %v377, %v726
        %v805 = vadd.f32 %v378, %v639
        %v806 = vadd.f32 %v379, %v728
        %v807 = vadd.f32 %v380, %v642
        %v808 = vadd.f32 %v381, %v731
        %v809 = vadd.f32 %v382, %v644
        %v810 = vadd.f32 %v383, %v733
        %v811 = vadd.f32 %v384, %v647
        %v812 = vadd.f32 %v385, %v736
        %v813 = vadd.f32 %v386, %v649
        %v814 = vadd.f32 %v387, %v738
        %v815 = vadd.f32 %v388, %v652
        %v816 = vadd.f32 %v389, %v741
        %v817 = vadd.f32 %v390, %v654
        %v818 = vadd.f32 %v391, %v743
        %v819 = vadd.f32 %v392, %v657
        %v820 = vadd.f32 %v393, %v746
        %v821 = vadd.f32 %v394, %v659
        %v822 = vadd.f32 %v395, %v748
        %v823 = vadd.f32 %v396, %v662
        %v824 = vadd.f32 %v397, %v751
        %v825 = vadd.f32 %v398, %v664
        %v826 = vadd.f32 %v399, %v753
        %v827 = vadd.f32 %v400, %v667
        %v828 = vadd.f32 %v401, %v756
        %v829 = vadd.f32 %v402, %v669
        %v830 = vadd.f32 %v403, %v758
        %v831 = vadd.f32 %v404, %v672
        %v832 = vadd.f32 %v405, %v761
        %v833 = vadd.f32 %v406, %v674
        %v834 = vadd.f32 %v407, %v763
        %v835 = vadd.f32 %v408, %v677
        %v836 = vadd.f32 %v409, %v766
        %v837 = vadd.f32 %v410, %v679
        %v838 = vadd.f32 %v411, %v768
        %v839 = vadd.f32 %v412, %v682
        %v840 = vadd.f32 %v413, %v771
        %v841 = vadd.f32 %v414, %v684
        %v842 = vadd.f32 %v415, %v773
        %v843 = vadd.f32 %v416, %v687
        %v844 = vadd.f32 %v417, %v776
        %v845 = vadd.f32 %v418, %v689
        %v846 = vadd.f32 %v419, %v778
        %v847 = vadd.f32 %v420, %v692
        %v848 = vadd.f32 %v421, %v781
        %v849 = vadd.f32 %v422, %v694
        %v850 = vadd.f32 %v423, %v783
        %v851 = vadd.f32 %v424, %v697
        %v852 = vadd.f32 %v425, %v786
        %v853 = vadd.f32 %v426, %v699
        %v854 = vadd.f32 %v427, %v788
        %v855 = vadd.f32 %v428, %v702
        %v856 = vadd.f32 %v429, %v791
        %v857 = vadd.f32 %v430, %v704
        %v858 = vadd.f32 %v431, %v793
        %859 = vst [vmem:[#allocation2] sm:$0xff] %v795
        %860 = vst [vmem:[#allocation2 + $0x8] sm:$0xff] %v796
        %861 = vst [vmem:[#allocation2 + $0x10] sm:$0xff] %v797
        %862 = vst [vmem:[#allocation2 + $0x18] sm:$0xff] %v798
        %863 = vst [vmem:[#allocation2 + $0x20] sm:$0xff] %v799
        %864 = vst [vmem:[#allocation2 + $0x28] sm:$0xff] %v800
        %865 = vst [vmem:[#allocation2 + $0x30] sm:$0xff] %v801
        %866 = vst [vmem:[#allocation2 + $0x38] sm:$0xff] %v802
        %867 = vst [vmem:[#allocation2 + $0x40] sm:$0xff] %v803
        %868 = vst [vmem:[#allocation2 + $0x48] sm:$0xff] %v804
        %869 = vst [vmem:[#allocation2 + $0x50] sm:$0xff] %v805
        %870 = vst [vmem:[#allocation2 + $0x58] sm:$0xff] %v806
        %871 = vst [vmem:[#allocation2 + $0x60] sm:$0xff] %v807
        %872 = vst [vmem:[#allocation2 + $0x68] sm:$0xff] %v808
        %873 = vst [vmem:[#allocation2 + $0x70] sm:$0xff] %v809
        %874 = vst [vmem:[#allocation2 + $0x78] sm:$0xff] %v810
        %875 = vst [vmem:[#allocation2 + $0x80] sm:$0xff] %v811
        %876 = vst [vmem:[#allocation2 + $0x88] sm:$0xff] %v812
        %877 = vst [vmem:[#allocation2 + $0x90] sm:$0xff] %v813
        %878 = vst [vmem:[#allocation2 + $0x98] sm:$0xff] %v814
        %879 = vst [vmem:[#allocation2 + $0xa0] sm:$0xff] %v815
        %880 = vst [vmem:[#allocation2 + $0xa8] sm:$0xff] %v816
        %881 = vst [vmem:[#allocation2 + $0xb0] sm:$0xff] %v817
        %882 = vst [vmem:[#allocation2 + $0xb8] sm:$0xff] %v818
        %883 = vst [vmem:[#allocation2 + $0xc0] sm:$0xff] %v819
        %884 = vst [vmem:[#allocation2 + $0xc8] sm:$0xff] %v820
        %885 = vst [vmem:[#allocation2 + $0xd0] sm:$0xff] %v821
        %886 = vst [vmem:[#allocation2 + $0xd8] sm:$0xff] %v822
        %887 = vst [vmem:[#allocation2 + $0xe0] sm:$0xff] %v823
        %888 = vst [vmem:[#allocation2 + $0xe8] sm:$0xff] %v824
        %889 = vst [vmem:[#allocation2 + $0xf0] sm:$0xff] %v825
        %890 = vst [vmem:[#allocation2 + $0xf8] sm:$0xff] %v826
        %891 = vst [vmem:[#allocation2 + $0x100] sm:$0xff] %v827
        %892 = vst [vmem:[#allocation2 + $0x108] sm:$0xff] %v828
        %893 = vst [vmem:[#allocation2 + $0x110] sm:$0xff] %v829
        %894 = vst [vmem:[#allocation2 + $0x118] sm:$0xff] %v830
        %895 = vst [vmem:[#allocation2 + $0x120] sm:$0xff] %v831
        %896 = vst [vmem:[#allocation2 + $0x128] sm:$0xff] %v832
        %897 = vst [vmem:[#allocation2 + $0x130] sm:$0xff] %v833
        %898 = vst [vmem:[#allocation2 + $0x138] sm:$0xff] %v834
        %899 = vst [vmem:[#allocation2 + $0x140] sm:$0xff] %v835
        %900 = vst [vmem:[#allocation2 + $0x148] sm:$0xff] %v836
        %901 = vst [vmem:[#allocation2 + $0x150] sm:$0xff] %v837
        %902 = vst [vmem:[#allocation2 + $0x158] sm:$0xff] %v838
        %903 = vst [vmem:[#allocation2 + $0x160] sm:$0xff] %v839
        %904 = vst [vmem:[#allocation2 + $0x168] sm:$0xff] %v840
        %905 = vst [vmem:[#allocation2 + $0x170] sm:$0xff] %v841
        %906 = vst [vmem:[#allocation2 + $0x178] sm:$0xff] %v842
        %907 = vst [vmem:[#allocation2 + $0x180] sm:$0xff] %v843
        %908 = vst [vmem:[#allocation2 + $0x188] sm:$0xff] %v844
        %909 = vst [vmem:[#allocation2 + $0x190] sm:$0xff] %v845
        %910 = vst [vmem:[#allocation2 + $0x198] sm:$0xff] %v846
        %911 = vst [vmem:[#allocation2 + $0x1a0] sm:$0xff] %v847
        %912 = vst [vmem:[#allocation2 + $0x1a8] sm:$0xff] %v848
        %913 = vst [vmem:[#allocation2 + $0x1b0] sm:$0xff] %v849
        %914 = vst [vmem:[#allocation2 + $0x1b8] sm:$0xff] %v850
        %915 = vst [vmem:[#allocation2 + $0x1c0] sm:$0xff] %v851
        %916 = vst [vmem:[#allocation2 + $0x1c8] sm:$0xff] %v852
        %917 = vst [vmem:[#allocation2 + $0x1d0] sm:$0xff] %v853
        %918 = vst [vmem:[#allocation2 + $0x1d8] sm:$0xff] %v854
        %919 = vst [vmem:[#allocation2 + $0x1e0] sm:$0xff] %v855
        %920 = vst [vmem:[#allocation2 + $0x1e8] sm:$0xff] %v856
        %921 = vst [vmem:[#allocation2 + $0x1f0] sm:$0xff] %v857
        %922 = vst [vmem:[#allocation2 + $0x1f8] sm:$0xff] %v858
        // Predicated region
        $region75: #{tpu_custom_call.1} parent=65 // pred_check
          %p923 = pneg %p300
        $region76: #{tpu_custom_call.1} parent=65 // pred_check_branch
          %925 = sbr.rel (%p923) target = $region78
        $region77: #{tpu_custom_call.1} parent=65 // pred_region
          %v926 = vld [vmem:[#allocation2] sm:$0xff]
          %v927 = vld [vmem:[#allocation2 + $0x8] sm:$0xff]
          %v928 = vld [vmem:[#allocation2 + $0x10] sm:$0xff]
          %v929 = vld [vmem:[#allocation2 + $0x18] sm:$0xff]
          %v930 = vld [vmem:[#allocation2 + $0x20] sm:$0xff]
          %v931 = vld [vmem:[#allocation2 + $0x28] sm:$0xff]
          %v932 = vld [vmem:[#allocation2 + $0x30] sm:$0xff]
          %v933 = vld [vmem:[#allocation2 + $0x38] sm:$0xff]
          %v934 = vld [vmem:[#allocation2 + $0x40] sm:$0xff]
          %v935 = vld [vmem:[#allocation2 + $0x48] sm:$0xff]
          %v936 = vld [vmem:[#allocation2 + $0x50] sm:$0xff]
          %v937 = vld [vmem:[#allocation2 + $0x58] sm:$0xff]
          %v938 = vld [vmem:[#allocation2 + $0x60] sm:$0xff]
          %v939 = vld [vmem:[#allocation2 + $0x68] sm:$0xff]
          %v940 = vld [vmem:[#allocation2 + $0x70] sm:$0xff]
          %v941 = vld [vmem:[#allocation2 + $0x78] sm:$0xff]
          %v942 = vld [vmem:[#allocation2 + $0x80] sm:$0xff]
          %v943 = vld [vmem:[#allocation2 + $0x88] sm:$0xff]
          %v944 = vld [vmem:[#allocation2 + $0x90] sm:$0xff]
          %v945 = vld [vmem:[#allocation2 + $0x98] sm:$0xff]
          %v946 = vld [vmem:[#allocation2 + $0xa0] sm:$0xff]
          %v947 = vld [vmem:[#allocation2 + $0xa8] sm:$0xff]
          %v948 = vld [vmem:[#allocation2 + $0xb0] sm:$0xff]
          %v949 = vld [vmem:[#allocation2 + $0xb8] sm:$0xff]
          %v950 = vld [vmem:[#allocation2 + $0xc0] sm:$0xff]
          %v951 = vld [vmem:[#allocation2 + $0xc8] sm:$0xff]
          %v952 = vld [vmem:[#allocation2 + $0xd0] sm:$0xff]
          %v953 = vld [vmem:[#allocation2 + $0xd8] sm:$0xff]
          %v954 = vld [vmem:[#allocation2 + $0xe0] sm:$0xff]
          %v955 = vld [vmem:[#allocation2 + $0xe8] sm:$0xff]
          %v956 = vld [vmem:[#allocation2 + $0xf0] sm:$0xff]
          %v957 = vld [vmem:[#allocation2 + $0xf8] sm:$0xff]
          %v958 = vld [vmem:[#allocation2 + $0x100] sm:$0xff]
          %v959 = vld [vmem:[#allocation2 + $0x108] sm:$0xff]
          %v960 = vld [vmem:[#allocation2 + $0x110] sm:$0xff]
          %v961 = vld [vmem:[#allocation2 + $0x118] sm:$0xff]
          %v962 = vld [vmem:[#allocation2 + $0x120] sm:$0xff]
          %v963 = vld [vmem:[#allocation2 + $0x128] sm:$0xff]
          %v964 = vld [vmem:[#allocation2 + $0x130] sm:$0xff]
          %v965 = vld [vmem:[#allocation2 + $0x138] sm:$0xff]
          %v966 = vld [vmem:[#allocation2 + $0x140] sm:$0xff]
          %v967 = vld [vmem:[#allocation2 + $0x148] sm:$0xff]
          %v968 = vld [vmem:[#allocation2 + $0x150] sm:$0xff]
          %v969 = vld [vmem:[#allocation2 + $0x158] sm:$0xff]
          %v970 = vld [vmem:[#allocation2 + $0x160] sm:$0xff]
          %v971 = vld [vmem:[#allocation2 + $0x168] sm:$0xff]
          %v972 = vld [vmem:[#allocation2 + $0x170] sm:$0xff]
          %v973 = vld [vmem:[#allocation2 + $0x178] sm:$0xff]
          %v974 = vld [vmem:[#allocation2 + $0x180] sm:$0xff]
          %v975 = vld [vmem:[#allocation2 + $0x188] sm:$0xff]
          %v976 = vld [vmem:[#allocation2 + $0x190] sm:$0xff]
          %v977 = vld [vmem:[#allocation2 + $0x198] sm:$0xff]
          %v978 = vld [vmem:[#allocation2 + $0x1a0] sm:$0xff]
          %v979 = vld [vmem:[#allocation2 + $0x1a8] sm:$0xff]
          %v980 = vld [vmem:[#allocation2 + $0x1b0] sm:$0xff]
          %v981 = vld [vmem:[#allocation2 + $0x1b8] sm:$0xff]
          %v982 = vld [vmem:[#allocation2 + $0x1c0] sm:$0xff]
          %v983 = vld [vmem:[#allocation2 + $0x1c8] sm:$0xff]
          %v984 = vld [vmem:[#allocation2 + $0x1d0] sm:$0xff]
          %v985 = vld [vmem:[#allocation2 + $0x1d8] sm:$0xff]
          %v986 = vld [vmem:[#allocation2 + $0x1e0] sm:$0xff]
          %v987 = vld [vmem:[#allocation2 + $0x1e8] sm:$0xff]
          %v988 = vld [vmem:[#allocation2 + $0x1f0] sm:$0xff]
          %v989 = vld [vmem:[#allocation2 + $0x1f8] sm:$0xff]
          %v990 = vld [vmem:[%s295] sm:$0x3]
          %v992 = vperm.slane %v990, 0
          %v993 = vperm.slane %v990, 1
          %v996 = vadd.f32 %v926, %v992
          %v997 = vadd.f32 %v927, %v993
          %v998 = vadd.f32 %v928, %v992
          %v999 = vadd.f32 %v929, %v993
          %v1000 = vadd.f32 %v930, %v992
          %v1001 = vadd.f32 %v931, %v993
          %v1002 = vadd.f32 %v932, %v992
          %v1003 = vadd.f32 %v933, %v993
          %v1004 = vadd.f32 %v934, %v992
          %v1005 = vadd.f32 %v935, %v993
          %v1006 = vadd.f32 %v936, %v992
          %v1007 = vadd.f32 %v937, %v993
          %v1008 = vadd.f32 %v938, %v992
          %v1009 = vadd.f32 %v939, %v993
          %v1010 = vadd.f32 %v940, %v992
          %v1011 = vadd.f32 %v941, %v993
          %v1012 = vadd.f32 %v942, %v992
          %v1013 = vadd.f32 %v943, %v993
          %v1014 = vadd.f32 %v944, %v992
          %v1015 = vadd.f32 %v945, %v993
          %v1016 = vadd.f32 %v946, %v992
          %v1017 = vadd.f32 %v947, %v993
          %v1018 = vadd.f32 %v948, %v992
          %v1019 = vadd.f32 %v949, %v993
          %v1020 = vadd.f32 %v950, %v992
          %v1021 = vadd.f32 %v951, %v993
          %v1022 = vadd.f32 %v952, %v992
          %v1023 = vadd.f32 %v953, %v993
          %v1024 = vadd.f32 %v954, %v992
          %v1025 = vadd.f32 %v955, %v993
          %v1026 = vadd.f32 %v956, %v992
          %v1027 = vadd.f32 %v957, %v993
          %v1028 = vadd.f32 %v958, %v992
          %v1029 = vadd.f32 %v959, %v993
          %v1030 = vadd.f32 %v960, %v992
          %v1031 = vadd.f32 %v961, %v993
          %v1032 = vadd.f32 %v962, %v992
          %v1033 = vadd.f32 %v963, %v993
          %v1034 = vadd.f32 %v964, %v992
          %v1035 = vadd.f32 %v965, %v993
          %v1036 = vadd.f32 %v966, %v992
          %v1037 = vadd.f32 %v967, %v993
          %v1038 = vadd.f32 %v968, %v992
          %v1039 = vadd.f32 %v969, %v993
          %v1040 = vadd.f32 %v970, %v992
          %v1041 = vadd.f32 %v971, %v993
          %v1042 = vadd.f32 %v972, %v992
          %v1043 = vadd.f32 %v973, %v993
          %v1044 = vadd.f32 %v974, %v992
          %v1045 = vadd.f32 %v975, %v993
          %v1046 = vadd.f32 %v976, %v992
          %v1047 = vadd.f32 %v977, %v993
          %v1048 = vadd.f32 %v978, %v992
          %v1049 = vadd.f32 %v979, %v993
          %v1050 = vadd.f32 %v980, %v992
          %v1051 = vadd.f32 %v981, %v993
          %v1052 = vadd.f32 %v982, %v992
          %v1053 = vadd.f32 %v983, %v993
          %v1054 = vadd.f32 %v984, %v992
          %v1055 = vadd.f32 %v985, %v993
          %v1056 = vadd.f32 %v986, %v992
          %v1057 = vadd.f32 %v987, %v993
          %v1058 = vadd.f32 %v988, %v992
          %v1059 = vadd.f32 %v989, %v993
          %v1060 = vpack.c.bf16 %v997, %v996
          %v1061 = vpack.c.bf16 %v999, %v998
          %v1062 = vpack.c.bf16 %v1001, %v1000
          %v1063 = vpack.c.bf16 %v1003, %v1002
          %v1064 = vpack.c.bf16 %v1005, %v1004
          %v1065 = vpack.c.bf16 %v1007, %v1006
          %v1066 = vpack.c.bf16 %v1009, %v1008
          %v1067 = vpack.c.bf16 %v1011, %v1010
          %v1068 = vpack.c.bf16 %v1013, %v1012
          %v1069 = vpack.c.bf16 %v1015, %v1014
          %v1070 = vpack.c.bf16 %v1017, %v1016
          %v1071 = vpack.c.bf16 %v1019, %v1018
          %v1072 = vpack.c.bf16 %v1021, %v1020
          %v1073 = vpack.c.bf16 %v1023, %v1022
          %v1074 = vpack.c.bf16 %v1025, %v1024
          %v1075 = vpack.c.bf16 %v1027, %v1026
          %v1076 = vpack.c.bf16 %v1029, %v1028
          %v1077 = vpack.c.bf16 %v1031, %v1030
          %v1078 = vpack.c.bf16 %v1033, %v1032
          %v1079 = vpack.c.bf16 %v1035, %v1034
          %v1080 = vpack.c.bf16 %v1037, %v1036
          %v1081 = vpack.c.bf16 %v1039, %v1038
          %v1082 = vpack.c.bf16 %v1041, %v1040
          %v1083 = vpack.c.bf16 %v1043, %v1042
          %v1084 = vpack.c.bf16 %v1045, %v1044
          %v1085 = vpack.c.bf16 %v1047, %v1046
          %v1086 = vpack.c.bf16 %v1049, %v1048
          %v1087 = vpack.c.bf16 %v1051, %v1050
          %v1088 = vpack.c.bf16 %v1053, %v1052
          %v1089 = vpack.c.bf16 %v1055, %v1054
          %v1090 = vpack.c.bf16 %v1057, %v1056
          %v1091 = vpack.c.bf16 %v1059, %v1058
          %1092 = vst [vmem:[%s280] sm:$0xff] %v1060
          %1093 = vst [vmem:[%s280 + $0x8] sm:$0xff] %v1061
          %1094 = vst [vmem:[%s280 + $0x10] sm:$0xff] %v1062
          %1095 = vst [vmem:[%s280 + $0x18] sm:$0xff] %v1063
          %1096 = vst [vmem:[%s280 + $0x20] sm:$0xff] %v1064
          %1097 = vst [vmem:[%s280 + $0x28] sm:$0xff] %v1065
          %1098 = vst [vmem:[%s280 + $0x30] sm:$0xff] %v1066
          %1099 = vst [vmem:[%s280 + $0x38] sm:$0xff] %v1067
          %1100 = vst [vmem:[%s280 + $0x40] sm:$0xff] %v1068
          %1101 = vst [vmem:[%s280 + $0x48] sm:$0xff] %v1069
          %1102 = vst [vmem:[%s280 + $0x50] sm:$0xff] %v1070
          %1103 = vst [vmem:[%s280 + $0x58] sm:$0xff] %v1071
          %1104 = vst [vmem:[%s280 + $0x60] sm:$0xff] %v1072
          %1105 = vst [vmem:[%s280 + $0x68] sm:$0xff] %v1073
          %1106 = vst [vmem:[%s280 + $0x70] sm:$0xff] %v1074
          %1107 = vst [vmem:[%s280 + $0x78] sm:$0xff] %v1075
          %1108 = vst [vmem:[%s280 + $0x80] sm:$0xff] %v1076
          %1109 = vst [vmem:[%s280 + $0x88] sm:$0xff] %v1077
          %1110 = vst [vmem:[%s280 + $0x90] sm:$0xff] %v1078
          %1111 = vst [vmem:[%s280 + $0x98] sm:$0xff] %v1079
          %1112 = vst [vmem:[%s280 + $0xa0] sm:$0xff] %v1080
          %1113 = vst [vmem:[%s280 + $0xa8] sm:$0xff] %v1081
          %1114 = vst [vmem:[%s280 + $0xb0] sm:$0xff] %v1082
          %1115 = vst [vmem:[%s280 + $0xb8] sm:$0xff] %v1083
          %1116 = vst [vmem:[%s280 + $0xc0] sm:$0xff] %v1084
          %1117 = vst [vmem:[%s280 + $0xc8] sm:$0xff] %v1085
          %1118 = vst [vmem:[%s280 + $0xd0] sm:$0xff] %v1086
          %1119 = vst [vmem:[%s280 + $0xd8] sm:$0xff] %v1087
          %1120 = vst [vmem:[%s280 + $0xe0] sm:$0xff] %v1088
          %1121 = vst [vmem:[%s280 + $0xe8] sm:$0xff] %v1089
          %1122 = vst [vmem:[%s280 + $0xf0] sm:$0xff] %v1090
          %1123 = vst [vmem:[%s280 + $0xf8] sm:$0xff] %v1091
        $region78: #{tpu_custom_call.1} parent=65 // pred_fallthru
          _
        %s1124 = sand.u32 %s128, 1
        %s1125 = scalar_lea.sflag [#allocation5], %s1124
        %s1126 = sand.u32 %s128, 1
        %s1127 = smul.addr %s1126, 256
        %s1128 = scalar_lea.vmem [#allocation4], %s1127
        // Predicated region
        $region79: #{tpu_custom_call.1} parent=65 // pred_check
          %p1129 = pneg %p138
        $region80: #{tpu_custom_call.1} parent=65 // pred_check_branch
          %1131 = sbr.rel (%p1129) target = $region82
        $region81: #{tpu_custom_call.1} parent=65 // pred_region
          %s1132 = smul.u32 32, %s22
          %s1133 = smul.u32 2, %s23
          %1135 = vsyncadd %s1125, 0
          %s1136 = smul.addr %s1132, 4
          %s1137 = sadd.s32 %s1133, %s1136
          %s1138 = smul.addr %s1137, 4
          %s1139 = scalar_lea.hbm %s3, %s1138
          %s1140 = sshll.u32 %s1128, 4
          %s1141 = int_to_ptr.vmem [resolvable:$true] %s1140
          %s1142 = sshll.u32 %s1139, 4
          %s1143 = int_to_ptr.hbm [resolvable:$true] %s1142
          %1148 = dma.vmem_to_hbm [thread:$0]  %s1141, 4096, %s1143, %s1125, 128, 256, 8
        $region82: #{tpu_custom_call.1} parent=65 // pred_fallthru
          _
      $region66: #{tpu_custom_call.1} parent=5 // pred_fallthru
        _
      %p1149 = scmp.le.s32.totalorder 2, %s12
      // Predicated region
      $region83: #{tpu_custom_call.1} parent=5 // pred_check
        %p1150 = pneg %p1149
      $region84: #{tpu_custom_call.1} parent=5 // pred_check_branch
        %1152 = sbr.rel (%p1150) target = $region86
      $region85: #{tpu_custom_call.1} parent=5 // pred_region
        %s1153 = ssub.s32 %s12, 2
        // Predicated region
        $region87: #{tpu_custom_call.1} parent=85 // pred_check
          %p1154 = pneg %p144
        $region88: #{tpu_custom_call.1} parent=85 // pred_check_branch
          %1156 = sbr.rel (%p1154) target = $region90
        $region89: #{tpu_custom_call.1} parent=85 // pred_region
          %s1157 = sand.u32 %s129, 1
          %s1158 = scalar_lea.sflag [#allocation5], %s1157
          %s1159 = sand.u32 %s129, 1
          %s1160 = smul.addr %s1159, 256
          %s1161 = scalar_lea.vmem [#allocation4], %s1160
          %1163 = dma.done %s1158, 4096
        $region90: #{tpu_custom_call.1} parent=85 // pred_fallthru
          _
      $region86: #{tpu_custom_call.1} parent=5 // pred_fallthru
        _
    $region6: #{tpu_custom_call.1} parent=1 // loop_footer
      %s16 = sadd.s32 1, %s12
    $region7: #{tpu_custom_call.1} parent=1 // loop_footer_branch
      %11 = sbr.rel target = $region3
    $region8: #{tpu_custom_call.1} parent=1 // loop_exit
      _
    %1164 = vsyncpa [#allocation5], 1
    %s1165 = scalar_lea.sflag [#allocation5], 1
    %1166 = vsyncpa %s1165, 1

</llo_original>
